<compile_context>
chip_gen: v7x
topology: tpu7x:2x2x1
jax: 0.10.0
libtpu: 0.0.40
codegen_flags: <defaults>
</compile_context>

<pallas_src>
import functools

import jax
import jax.numpy as jnp
from jax.experimental import pallas as pl
from jax.experimental.pallas import tpu as pltpu

EPS = 1e-5          # PyTorch BatchNorm1d default eps
H1, H2 = 512, 128   # hidden widths from the module
LANE = 128


def _round_up(n, m):
    return ((n + m - 1) // m) * m


# ----------------------------------------------------------------------------
# Kernel
# ----------------------------------------------------------------------------
def mlp_kernel(x_ref, w1_ref, b1_ref, w2_ref, b2_ref, w3_ref, b3_ref, out_ref):
    # x arrives in f32 straight from HBM; cast to bf16 for the MXU here so the
    # wrapper never materializes a second (bf16) copy of x in HBM.
    x = x_ref[...].astype(jnp.bfloat16)

    # Layer 1: Linear (BN folded in) + ReLU.  Dropout = identity in eval mode.
    h = jnp.dot(x, w1_ref[...], preferred_element_type=jnp.float32)
    h = jnp.maximum(h + b1_ref[...], 0.0)

    # Layer 2: Linear (BN folded in) + ReLU.
    h = jnp.dot(h.astype(w2_ref.dtype), w2_ref[...],
                preferred_element_type=jnp.float32)
    h = jnp.maximum(h + b2_ref[...], 0.0)

    # Layer 3: Linear (output columns padded to a lane-dense 128 width).
    out = jnp.dot(h.astype(w3_ref.dtype), w3_ref[...],
                  preferred_element_type=jnp.float32) + b3_ref[...]
    out_ref[...] = out.astype(out_ref.dtype)   # bf16 writeback


# ----------------------------------------------------------------------------
# Param prep (one-time): fold BN, pad to 128-clean shapes, cast to bf16
# ----------------------------------------------------------------------------
def _fold_bn(w, b, gamma, beta, mean, var):
    """Fold eval-mode BatchNorm1d into the preceding Linear (w is [in, out])."""
    scale = gamma * jax.lax.rsqrt(var + EPS)            # (out,)
    return w * scale[None, :], (b - mean) * scale + beta


def prep_params(raw, in_dim, num_classes):
    w1, b1 = _fold_bn(raw["w1"], raw["b1"], raw["g1"], raw["be1"],
                      raw["m1"], raw["v1"])
    w2, b2 = _fold_bn(raw["w2"], raw["b2"], raw["g2"], raw["be2"],
                      raw["m2"], raw["v2"])
    w3, b3 = raw["w3"], raw["b3"]

    in_p = _round_up(in_dim, LANE)
    nc_p = _round_up(num_classes, LANE)
    if in_p != in_dim:                       # zero-pad contraction dim of W1
        w1 = jnp.pad(w1, ((0, in_p - in_dim), (0, 0)))
    if nc_p != num_classes:                  # lane-dense output slab
        w3 = jnp.pad(w3, ((0, 0), (0, nc_p - num_classes)))
        b3 = jnp.pad(b3, (0, nc_p - num_classes))

    return {
        "w1": w1.astype(jnp.bfloat16), "b1": b1.reshape(1, -1).astype(jnp.float32),
        "w2": w2.astype(jnp.bfloat16), "b2": b2.reshape(1, -1).astype(jnp.float32),
        "w3": w3.astype(jnp.bfloat16), "b3": b3.reshape(1, -1).astype(jnp.float32),
    }


# ----------------------------------------------------------------------------
# Batch tiling selection
# ----------------------------------------------------------------------------
def _choose_batch_tiling(B, in_p):
    """Return (tile_b, padded_B)."""
    # Keep the (double-buffered, f32) x tile well under VMEM so the same
    # tiling is safe on v7x's 64 MiB VMEM even for wide in_dim.
    x_budget = 24 * 1024 * 1024                      # bytes for 2 x-buffers
    max_tile = max(128, (x_budget // (8 * in_p)) // 128 * 128)

    if B < 256:
        # One full-array block: legal for any B (block == full array), no
        # batch padding, no wasted rows.  v7x 2-way split isn't worth the
        # per-step overhead at this size.
        return B, B

    best_key, best = None, None
    for t in (2048, 1024, 512, 256, 128):
        if t > max_tile:
            continue
        pB = _round_up(B, t)
        steps = pB // t
        # priority: (1) minimal batch-padding waste, (2) >=2 grid steps so
        # v7x's two TensorCores both get work, (3) larger tile to amortize
        # per-grid-step overhead.
        key = (pB - B, 0 if steps >= 2 else 1, -t)
        if best_key is None or key < best_key:
            best_key, best = key, (t, pB)
    if best is None:                                  # extremely wide in_dim
        t = max_tile
        return t, _round_up(B, t)
    return best


# ----------------------------------------------------------------------------
# Forward wrapper
# ----------------------------------------------------------------------------
@functools.partial(jax.jit, static_argnames=("num_classes",))
def mlp_forward(x, kp, num_classes):
    B, in_dim = x.shape
    in_p = kp["w1"].shape[0]
    nc_p = kp["w3"].shape[1]

    tile_b, pB = _choose_batch_tiling(B, in_p)

    # Pad only when actually required (keeps x in its native f32; the bf16
    # cast is done in-kernel, avoiding an extra HBM read+write pass over x).
    if pB != B or in_p != in_dim:
        x = jnp.pad(x, ((0, pB - B), (0, in_p - in_dim)))

    n_steps = pB // tile_b

    weight_bytes = 2 * (in_p * H1 + H1 * H2 + H2 * nc_p) + 4 * (H1 + H2 + nc_p)
    cost = pl.CostEstimate(
        flops=2 * pB * (in_p * H1 + H1 * H2 + H2 * nc_p),
        transcendentals=0,
        bytes_accessed=pB * in_p * 4 + pB * nc_p * 2 + weight_bytes,
    )

    resident = lambda shape: pl.BlockSpec(shape, lambda i: (0, 0))

    out_p = pl.pallas_call(
        mlp_kernel,
        out_shape=jax.ShapeDtypeStruct((pB, nc_p), jnp.bfloat16),
        grid=(n_steps,),
        in_specs=[
            pl.BlockSpec((tile_b, in_p), lambda i: (i, 0)),   # x tile (f32, pipelined)
            resident((in_p, H1)), resident((1, H1)),          # W1', b1'
            resident((H1, H2)),   resident((1, H2)),          # W2', b2'
            resident((H2, nc_p)), resident((1, nc_p)),        # W3,  b3
        ],
        out_specs=pl.BlockSpec((tile_b, nc_p), lambda i: (i, 0)),
        compiler_params=pltpu.CompilerParams(
            dimension_semantics=("parallel",),
            vmem_limit_bytes=48 * 1024 * 1024,
        ),
        cost_estimate=cost,
    )(x, kp["w1"], kp["b1"], kp["w2"], kp["b2"], kp["w3"], kp["b3"])

    # Slice off batch/class padding; cheap cast back to f32 for downstream use.
    return out_p[:B, :num_classes].astype(jnp.float32)


# ----------------------------------------------------------------------------
# Reference + test harness
# ----------------------------------------------------------------------------
def make_raw_params(key, in_dim, num_classes):
    """PyTorch-equivalent params (Linear weights stored as [in, out])."""
    ks = jax.random.split(key, 8)
    return {
        "w1": jax.random.normal(ks[0], (in_dim, H1), jnp.float32) * 0.05,
        "b1": jax.random.normal(ks[1], (H1,), jnp.float32) * 0.05,
        "g1": jnp.full((H1,), 1.1, jnp.float32),
        "be1": jnp.full((H1,), 0.02, jnp.float32),
        "m1": jax.random.normal(ks[6], (H1,), jnp.float32) * 0.1,
        "v1": jnp.full((H1,), 0.9, jnp.float32),
        "w2": jax.random.normal(ks[2], (H1, H2), jnp.float32) * 0.05,
        "b2": jax.random.normal(ks[3], (H2,), jnp.float32) * 0.05,
        "g2": jnp.full((H2,), 0.95, jnp.float32),
        "be2": jnp.full((H2,), -0.01, jnp.float32),
        "m2": jax.random.normal(ks[7], (H2,), jnp.float32) * 0.1,
        "v2": jnp.full((H2,), 1.05, jnp.float32),
        "w3": jax.random.normal(ks[4], (H2, num_classes), jnp.float32) * 0.05,
        "b3": jax.random.normal(ks[5], (num_classes,), jnp.float32) * 0.05,
    }


def mlp_ref(x, p):
    """Pure-JAX f32 reference of the eval-mode PyTorch forward."""
    h = x @ p["w1"] + p["b1"]
    h = (h - p["m1"]) * (p["g1"] / jnp.sqrt(p["v1"] + EPS)) + p["be1"]
    h = jnp.maximum(h, 0.0)
    h = h @ p["w2"] + p["b2"]
    h = (h - p["m2"]) * (p["g2"] / jnp.sqrt(p["v2"] + EPS)) + p["be2"]
    h = jnp.maximum(h, 0.0)
    return h @ p["w3"] + p["b3"]


if __name__ == "__main__":
    key = jax.random.PRNGKey(0)
    kx, kparam = jax.random.split(key)

    B, in_dim, num_classes = 8, 256, 8
    x = jax.random.normal(kx, (B, in_dim), jnp.float32)
    raw = make_raw_params(kparam, in_dim, num_classes)
    params = prep_params(raw, in_dim, num_classes)

    out = mlp_forward(x, params, num_classes)
    out = jax.block_until_ready(out)

    ref = mlp_ref(x, raw)
    assert out.shape == (B, num_classes)
    err = float(jnp.max(jnp.abs(out - ref)))
    # bf16 weights/activations + bf16 output quantization -> slightly looser
    # tolerance than a pure-f32 path.
    assert jnp.allclose(out, ref, atol=5e-2, rtol=5e-2), (
        f"mismatch vs reference, max abs err = {err}")

    print("KERNEL_OK")
</pallas_src>

<mosaic_0001>
module attributes {stable_mosaic.version = 11 : i64} {
  func.func @mlp_kernel(%arg0: i32, %arg1: memref<8x256xf32, #tpu.memory_space<vmem>>, %arg2: memref<256x512xbf16, #tpu.memory_space<vmem>>, %arg3: memref<1x512xf32, #tpu.memory_space<vmem>>, %arg4: memref<512x128xbf16, #tpu.memory_space<vmem>>, %arg5: memref<1x128xf32, #tpu.memory_space<vmem>>, %arg6: memref<128x128xbf16, #tpu.memory_space<vmem>>, %arg7: memref<1x128xf32, #tpu.memory_space<vmem>>, %arg8: memref<8x128xbf16, #tpu.memory_space<vmem>>) attributes {dimension_semantics = [#tpu.dimension_semantics<parallel>], iteration_bounds = array<i64: 1>, scalar_prefetch = 0 : i64, scratch_operands = 0 : i64, tpu.core_type = #tpu.core_type<tc>, window_params = [{transform_indices = @transform_0, window_bounds = array<i64: 8, 256>}, {pipeline_mode = #tpu.pipeline_mode<synchronous>, transform_indices = @transform_1, window_bounds = array<i64: 256, 512>}, {pipeline_mode = #tpu.pipeline_mode<synchronous>, transform_indices = @transform_2, window_bounds = array<i64: 1, 512>}, {pipeline_mode = #tpu.pipeline_mode<synchronous>, transform_indices = @transform_3, window_bounds = array<i64: 512, 128>}, {pipeline_mode = #tpu.pipeline_mode<synchronous>, transform_indices = @transform_4, window_bounds = array<i64: 1, 128>}, {pipeline_mode = #tpu.pipeline_mode<synchronous>, transform_indices = @transform_5, window_bounds = array<i64: 128, 128>}, {pipeline_mode = #tpu.pipeline_mode<synchronous>, transform_indices = @transform_6, window_bounds = array<i64: 1, 128>}, {transform_indices = @transform_7, window_bounds = array<i64: 8, 128>}]} {
    %c0 = arith.constant 0 : index
    %c0_0 = arith.constant 0 : index
    %0 = vector.load %arg1[%c0, %c0_0] : memref<8x256xf32, #tpu.memory_space<vmem>>, vector<8x256xf32>
    %1 = arith.truncf %0 : vector<8x256xf32> to vector<8x256xbf16>
    %c0_1 = arith.constant 0 : index
    %c0_2 = arith.constant 0 : index
    %2 = vector.load %arg2[%c0_1, %c0_2] : memref<256x512xbf16, #tpu.memory_space<vmem>>, vector<256x512xbf16>
    %cst = arith.constant dense<0.000000e+00> : vector<8x512xf32>
    %3 = tpu.matmul %1, %2, %cst {dimension_numbers = #tpu.dot_dimension_numbers<[1], [0], [0], [1], [0, 0, 1, 1], [], []>} : vector<8x256xbf16>, vector<256x512xbf16>, vector<8x512xf32> -> vector<8x512xf32>
    %c0_3 = arith.constant 0 : index
    %c0_4 = arith.constant 0 : index
    %4 = vector.load %arg3[%c0_3, %c0_4] : memref<1x512xf32, #tpu.memory_space<vmem>>, vector<1x512xf32>
    %5 = vector.broadcast %4 : vector<1x512xf32> to vector<8x512xf32>
    %6 = arith.addf %3, %5 : vector<8x512xf32>
    %cst_5 = arith.constant 0.000000e+00 : f32
    %7 = vector.broadcast %cst_5 : f32 to vector<8x512xf32>
    %8 = arith.maximumf %6, %7 : vector<8x512xf32>
    %9 = arith.truncf %8 : vector<8x512xf32> to vector<8x512xbf16>
    %c0_6 = arith.constant 0 : index
    %c0_7 = arith.constant 0 : index
    %10 = vector.load %arg4[%c0_6, %c0_7] : memref<512x128xbf16, #tpu.memory_space<vmem>>, vector<512x128xbf16>
    %cst_8 = arith.constant dense<0.000000e+00> : vector<8x128xf32>
    %11 = tpu.matmul %9, %10, %cst_8 {dimension_numbers = #tpu.dot_dimension_numbers<[1], [0], [0], [1], [0, 0, 1, 1], [], []>} : vector<8x512xbf16>, vector<512x128xbf16>, vector<8x128xf32> -> vector<8x128xf32>
    %c0_9 = arith.constant 0 : index
    %c0_10 = arith.constant 0 : index
    %12 = vector.load %arg5[%c0_9, %c0_10] : memref<1x128xf32, #tpu.memory_space<vmem>>, vector<1x128xf32>
    %13 = vector.broadcast %12 : vector<1x128xf32> to vector<8x128xf32>
    %14 = arith.addf %11, %13 : vector<8x128xf32>
    %cst_11 = arith.constant 0.000000e+00 : f32
    %15 = vector.broadcast %cst_11 : f32 to vector<8x128xf32>
    %16 = arith.maximumf %14, %15 : vector<8x128xf32>
    %17 = arith.truncf %16 : vector<8x128xf32> to vector<8x128xbf16>
    %c0_12 = arith.constant 0 : index
    %c0_13 = arith.constant 0 : index
    %18 = vector.load %arg6[%c0_12, %c0_13] : memref<128x128xbf16, #tpu.memory_space<vmem>>, vector<128x128xbf16>
    %cst_14 = arith.constant dense<0.000000e+00> : vector<8x128xf32>
    %19 = tpu.matmul %17, %18, %cst_14 {dimension_numbers = #tpu.dot_dimension_numbers<[1], [0], [0], [1], [0, 0, 1, 1], [], []>} : vector<8x128xbf16>, vector<128x128xbf16>, vector<8x128xf32> -> vector<8x128xf32>
    %c0_15 = arith.constant 0 : index
    %c0_16 = arith.constant 0 : index
    %20 = vector.load %arg7[%c0_15, %c0_16] : memref<1x128xf32, #tpu.memory_space<vmem>>, vector<1x128xf32>
    %21 = vector.broadcast %20 : vector<1x128xf32> to vector<8x128xf32>
    %22 = arith.addf %19, %21 : vector<8x128xf32>
    %23 = arith.truncf %22 : vector<8x128xf32> to vector<8x128xbf16>
    %c0_17 = arith.constant 0 : index
    %c0_18 = arith.constant 0 : index
    %24 = vector.load %arg8[%c0_17, %c0_18] : memref<8x128xbf16, #tpu.memory_space<vmem>>, vector<8x128xbf16>
    tpu.vector_store %arg8[%c0_17, %c0_18], %23 {strides = array<i32>} : memref<8x128xbf16, #tpu.memory_space<vmem>>, vector<8x128xbf16>,
    return
  }
  func.func @transform_0(%arg0: i32) -> (i32, i32) {
    %c0_i32 = arith.constant 0 : i32
    %c0_i32_0 = arith.constant 0 : i32
    return %arg0, %c0_i32 : i32, i32
  }
  func.func @transform_1(%arg0: i32) -> (i32, i32) {
    %c0_i32 = arith.constant 0 : i32
    %c0_i32_0 = arith.constant 0 : i32
    %c0_i32_1 = arith.constant 0 : i32
    return %c0_i32, %c0_i32_0 : i32, i32
  }
  func.func @transform_2(%arg0: i32) -> (i32, i32) {
    %c0_i32 = arith.constant 0 : i32
    %c0_i32_0 = arith.constant 0 : i32
    %c0_i32_1 = arith.constant 0 : i32
    return %c0_i32, %c0_i32_0 : i32, i32
  }
  func.func @transform_3(%arg0: i32) -> (i32, i32) {
    %c0_i32 = arith.constant 0 : i32
    %c0_i32_0 = arith.constant 0 : i32
    %c0_i32_1 = arith.constant 0 : i32
    return %c0_i32, %c0_i32_0 : i32, i32
  }
  func.func @transform_4(%arg0: i32) -> (i32, i32) {
    %c0_i32 = arith.constant 0 : i32
    %c0_i32_0 = arith.constant 0 : i32
    %c0_i32_1 = arith.constant 0 : i32
    return %c0_i32, %c0_i32_0 : i32, i32
  }
  func.func @transform_5(%arg0: i32) -> (i32, i32) {
    %c0_i32 = arith.constant 0 : i32
    %c0_i32_0 = arith.constant 0 : i32
    %c0_i32_1 = arith.constant 0 : i32
    return %c0_i32, %c0_i32_0 : i32, i32
  }
  func.func @transform_6(%arg0: i32) -> (i32, i32) {
    %c0_i32 = arith.constant 0 : i32
    %c0_i32_0 = arith.constant 0 : i32
    %c0_i32_1 = arith.constant 0 : i32
    return %c0_i32, %c0_i32_0 : i32, i32
  }
  func.func @transform_7(%arg0: i32) -> (i32, i32) {
    %c0_i32 = arith.constant 0 : i32
    %c0_i32_0 = arith.constant 0 : i32
    return %arg0, %c0_i32 : i32, i32
  }
}

</mosaic_0001>

<llo_original>
// kernel: mlp_forward.1
$region0: #{mlp_forward.1}
  #allocation0 [shape = 'u32[]', space=smem, size = 0x4, offset = 0x4, fixed_abs, tag = 'smem constant byte address 0x4 - core index']
  #allocation1 [shape = 'u32[144,128]{1,0:T(1,128)}', space=vmem, size = 0x12000, scoped, tag = 'internal scratch']
  %s0 = inlined_call_operand.hbm [shape: f32[8,256], index: 0, kind: input, shape index: {}]
  %s1 = inlined_call_operand.hbm [shape: bf16[256,512], index: 1, kind: input, shape index: {}]
  %s2 = inlined_call_operand.hbm [shape: f32[1,512], index: 2, kind: input, shape index: {}]
  %s3 = inlined_call_operand.hbm [shape: bf16[512,128], index: 3, kind: input, shape index: {}]
  %s4 = inlined_call_operand.vmem [shape: f32[1,128], index: 4, kind: input, shape index: {}]
  %s5 = inlined_call_operand.hbm [shape: bf16[128,128], index: 5, kind: input, shape index: {}]
  %s6 = inlined_call_operand.vmem [shape: f32[1,128], index: 6, kind: input, shape index: {}]
  %s7 = inlined_call_operand.vmem [shape: bf16[8,128], index: 7, kind: output, shape index: {}]
  %s8 = sld [smem:[#allocation0]]
  $region58: #{mlp_forward.1} parent=0
    _
  %s10 = ssub.s32 1, %s8
  %s11 = scalar_select 0, %s10, %s8
  $region1: #{mlp_forward.1} parent=0
    #allocation2 [shape = 'u8[8192]{0}', space=vmem, size = 0x2000, scoped, tag = 'input window, operand 0, single buffered']
    #allocation3 [shape = 's32[1]{0}', space=sflag, size = 0x4, scoped, tag = 'scoped memory for mlp_forward.1']
    #allocation4 [shape = 'u8[262144]{0}', space=vmem, size = 0x40000, scoped, tag = 'input window, operand 1, single buffered']
    #allocation5 [shape = 's32[1]{0}', space=sflag, size = 0x4, scoped, tag = 'scoped memory for mlp_forward.1']
    #allocation6 [shape = 'u8[2048]{0}', space=vmem, size = 0x800, scoped, tag = 'input window, operand 2, single buffered']
    #allocation7 [shape = 'u8[131072]{0}', space=vmem, size = 0x20000, scoped, tag = 'input window, operand 3, single buffered']
    #allocation8 [shape = 's32[1]{0}', space=sflag, size = 0x4, scoped, tag = 'scoped memory for mlp_forward.1']
    #allocation9 [shape = 'u8[32768]{0}', space=vmem, size = 0x8000, scoped, tag = 'input window, operand 5, single buffered']
    %12 = vsyncpa [#allocation3], 0
    %13 = vsyncpa [#allocation5], 0
    %14 = vsyncpa [#allocation8], 0
    // Predicated region
    $region2: #{mlp_forward.1} parent=1 // pred_check
      _
    $region3: #{mlp_forward.1} parent=1 // pred_check_branch
      %16 = sbr.rel (0) target = $region5
    $region4: #{mlp_forward.1} parent=1 // pred_region
      %s18 = ssub.s32 256, 256
      %19 = vsyncadd [#allocation3], %s18
      %s21 = sshll.u32 [#allocation2], 4
      %s22 = int_to_ptr.vmem [resolvable:$true] %s21
      %24 = dma.hbm_to_vmem [thread:$0]  %s0, 256, %s22, [#allocation3]
    $region5: #{mlp_forward.1} parent=1 // pred_fallthru
      _
    // Predicated region
    $region6: #{mlp_forward.1} parent=1 // pred_check
      _
    $region7: #{mlp_forward.1} parent=1 // pred_check_branch
      %26 = sbr.rel (0) target = $region9
    $region8: #{mlp_forward.1} parent=1 // pred_region
      %s28 = ssub.s32 8192, 8192
      %29 = vsyncadd [#allocation5], %s28
      %s30 = sshll.u32 [#allocation4], 4
      %s31 = int_to_ptr.vmem [resolvable:$true] %s30
      %36 = dma.hbm_to_vmem [thread:$0]  %s1, 8192, %s31, [#allocation5], 256, 256, 16
    $region9: #{mlp_forward.1} parent=1 // pred_fallthru
      _
    // Predicated region
    $region10: #{mlp_forward.1} parent=1 // pred_check
      _
    $region11: #{mlp_forward.1} parent=1 // pred_check_branch
      %38 = sbr.rel (0) target = $region13
    $region12: #{mlp_forward.1} parent=1 // pred_region
      %s40 = ssub.s32 64, 64
      %41 = vsyncadd [#allocation5], %s40
      %s43 = sshll.u32 [#allocation6], 4
      %s44 = int_to_ptr.vmem [resolvable:$true] %s43
      %46 = dma.hbm_to_vmem [thread:$0]  %s2, 64, %s44, [#allocation5]
    $region13: #{mlp_forward.1} parent=1 // pred_fallthru
      _
    // Predicated region
    $region14: #{mlp_forward.1} parent=1 // pred_check
      _
    $region15: #{mlp_forward.1} parent=1 // pred_check_branch
      %48 = sbr.rel (0) target = $region17
    $region16: #{mlp_forward.1} parent=1 // pred_region
      %s50 = ssub.s32 4096, 4096
      %51 = vsyncadd [#allocation8], %s50
      %s52 = sshll.u32 [#allocation7], 4
      %s53 = int_to_ptr.vmem [resolvable:$true] %s52
      %58 = dma.hbm_to_vmem [thread:$0]  %s3, 4096, %s53, [#allocation8], 64, 64, 4
    $region17: #{mlp_forward.1} parent=1 // pred_fallthru
      _
    // Predicated region
    $region18: #{mlp_forward.1} parent=1 // pred_check
      _
    $region19: #{mlp_forward.1} parent=1 // pred_check_branch
      %60 = sbr.rel (0) target = $region21
    $region20: #{mlp_forward.1} parent=1 // pred_region
      _
    $region21: #{mlp_forward.1} parent=1 // pred_fallthru
      _
    // Predicated region
    $region22: #{mlp_forward.1} parent=1 // pred_check
      _
    $region23: #{mlp_forward.1} parent=1 // pred_check_branch
      %62 = sbr.rel (0) target = $region25
    $region24: #{mlp_forward.1} parent=1 // pred_region
      %s64 = ssub.s32 1024, 1024
      %65 = vsyncadd [#allocation8], %s64
      %s66 = sshll.u32 [#allocation9], 4
      %s67 = int_to_ptr.vmem [resolvable:$true] %s66
      %72 = dma.hbm_to_vmem [thread:$0]  %s5, 1024, %s67, [#allocation8], 64, 64, 4
    $region25: #{mlp_forward.1} parent=1 // pred_fallthru
      _
    // Predicated region
    $region26: #{mlp_forward.1} parent=1 // pred_check
      _
    $region27: #{mlp_forward.1} parent=1 // pred_check_branch
      %74 = sbr.rel (0) target = $region29
    $region28: #{mlp_forward.1} parent=1 // pred_region
      _
    $region29: #{mlp_forward.1} parent=1 // pred_fallthru
      _
    // Predicated region
    $region30: #{mlp_forward.1} parent=1 // pred_check
      _
    $region31: #{mlp_forward.1} parent=1 // pred_check_branch
      %76 = sbr.rel (0) target = $region33
    $region32: #{mlp_forward.1} parent=1 // pred_region
      %77 = dma.done [#allocation3], 256
    $region33: #{mlp_forward.1} parent=1 // pred_fallthru
      _
    // Predicated region
    $region34: #{mlp_forward.1} parent=1 // pred_check
      _
    $region35: #{mlp_forward.1} parent=1 // pred_check_branch
      %79 = sbr.rel (0) target = $region37
    $region36: #{mlp_forward.1} parent=1 // pred_region
      %80 = dma.done [#allocation5], 8192
    $region37: #{mlp_forward.1} parent=1 // pred_fallthru
      _
    // Predicated region
    $region38: #{mlp_forward.1} parent=1 // pred_check
      _
    $region39: #{mlp_forward.1} parent=1 // pred_check_branch
      %82 = sbr.rel (0) target = $region41
    $region40: #{mlp_forward.1} parent=1 // pred_region
      %83 = dma.done [#allocation5], 64
    $region41: #{mlp_forward.1} parent=1 // pred_fallthru
      _
    // Predicated region
    $region42: #{mlp_forward.1} parent=1 // pred_check
      _
    $region43: #{mlp_forward.1} parent=1 // pred_check_branch
      %85 = sbr.rel (0) target = $region45
    $region44: #{mlp_forward.1} parent=1 // pred_region
      %86 = dma.done [#allocation8], 4096
    $region45: #{mlp_forward.1} parent=1 // pred_fallthru
      _
    // Predicated region
    $region46: #{mlp_forward.1} parent=1 // pred_check
      _
    $region47: #{mlp_forward.1} parent=1 // pred_check_branch
      %88 = sbr.rel (0) target = $region49
    $region48: #{mlp_forward.1} parent=1 // pred_region
      %89 = dma.done [#allocation8], 1024
    $region49: #{mlp_forward.1} parent=1 // pred_fallthru
      _
    %v91 = vld [vmem:[#allocation2] sm:$0xff]
    %v92 = vld [vmem:[#allocation2 + $0x8] sm:$0xff]
    %v93 = vpack.c.bf16 %v91, %v91
    %v94 = vpack.c.bf16 %v92, %v92
    %v95 = vld [vmem:[#allocation4] sm:$0xff]
    %v96 = vld [vmem:[#allocation4 + $0x8] sm:$0xff]
    %v97 = vld [vmem:[#allocation4 + $0x10] sm:$0xff]
    %v98 = vld [vmem:[#allocation4 + $0x18] sm:$0xff]
    %v99 = vld [vmem:[#allocation4 + $0x20] sm:$0xff]
    %v100 = vld [vmem:[#allocation4 + $0x28] sm:$0xff]
    %v101 = vld [vmem:[#allocation4 + $0x30] sm:$0xff]
    %v102 = vld [vmem:[#allocation4 + $0x38] sm:$0xff]
    %v103 = vld [vmem:[#allocation4 + $0x40] sm:$0xff]
    %v104 = vld [vmem:[#allocation4 + $0x48] sm:$0xff]
    %v105 = vld [vmem:[#allocation4 + $0x50] sm:$0xff]
    %v106 = vld [vmem:[#allocation4 + $0x58] sm:$0xff]
    %v107 = vld [vmem:[#allocation4 + $0x60] sm:$0xff]
    %v108 = vld [vmem:[#allocation4 + $0x68] sm:$0xff]
    %v109 = vld [vmem:[#allocation4 + $0x70] sm:$0xff]
    %v110 = vld [vmem:[#allocation4 + $0x78] sm:$0xff]
    %v111 = vld [vmem:[#allocation4 + $0x80] sm:$0xff]
    %v112 = vld [vmem:[#allocation4 + $0x88] sm:$0xff]
    %v113 = vld [vmem:[#allocation4 + $0x90] sm:$0xff]
    %v114 = vld [vmem:[#allocation4 + $0x98] sm:$0xff]
    %v115 = vld [vmem:[#allocation4 + $0xa0] sm:$0xff]
    %v116 = vld [vmem:[#allocation4 + $0xa8] sm:$0xff]
    %v117 = vld [vmem:[#allocation4 + $0xb0] sm:$0xff]
    %v118 = vld [vmem:[#allocation4 + $0xb8] sm:$0xff]
    %v119 = vld [vmem:[#allocation4 + $0xc0] sm:$0xff]
    %v120 = vld [vmem:[#allocation4 + $0xc8] sm:$0xff]
    %v121 = vld [vmem:[#allocation4 + $0xd0] sm:$0xff]
    %v122 = vld [vmem:[#allocation4 + $0xd8] sm:$0xff]
    %v123 = vld [vmem:[#allocation4 + $0xe0] sm:$0xff]
    %v124 = vld [vmem:[#allocation4 + $0xe8] sm:$0xff]
    %v125 = vld [vmem:[#allocation4 + $0xf0] sm:$0xff]
    %v126 = vld [vmem:[#allocation4 + $0xf8] sm:$0xff]
    %v127 = vld [vmem:[#allocation4 + $0x100] sm:$0xff]
    %v128 = vld [vmem:[#allocation4 + $0x108] sm:$0xff]
    %v129 = vld [vmem:[#allocation4 + $0x110] sm:$0xff]
    %v130 = vld [vmem:[#allocation4 + $0x118] sm:$0xff]
    %v131 = vld [vmem:[#allocation4 + $0x120] sm:$0xff]
    %v132 = vld [vmem:[#allocation4 + $0x128] sm:$0xff]
    %v133 = vld [vmem:[#allocation4 + $0x130] sm:$0xff]
    %v134 = vld [vmem:[#allocation4 + $0x138] sm:$0xff]
    %v135 = vld [vmem:[#allocation4 + $0x140] sm:$0xff]
    %v136 = vld [vmem:[#allocation4 + $0x148] sm:$0xff]
    %v137 = vld [vmem:[#allocation4 + $0x150] sm:$0xff]
    %v138 = vld [vmem:[#allocation4 + $0x158] sm:$0xff]
    %v139 = vld [vmem:[#allocation4 + $0x160] sm:$0xff]
    %v140 = vld [vmem:[#allocation4 + $0x168] sm:$0xff]
    %v141 = vld [vmem:[#allocation4 + $0x170] sm:$0xff]
    %v142 = vld [vmem:[#allocation4 + $0x178] sm:$0xff]
    %v143 = vld [vmem:[#allocation4 + $0x180] sm:$0xff]
    %v144 = vld [vmem:[#allocation4 + $0x188] sm:$0xff]
    %v145 = vld [vmem:[#allocation4 + $0x190] sm:$0xff]
    %v146 = vld [vmem:[#allocation4 + $0x198] sm:$0xff]
    %v147 = vld [vmem:[#allocation4 + $0x1a0] sm:$0xff]
    %v148 = vld [vmem:[#allocation4 + $0x1a8] sm:$0xff]
    %v149 = vld [vmem:[#allocation4 + $0x1b0] sm:$0xff]
    %v150 = vld [vmem:[#allocation4 + $0x1b8] sm:$0xff]
    %v151 = vld [vmem:[#allocation4 + $0x1c0] sm:$0xff]
    %v152 = vld [vmem:[#allocation4 + $0x1c8] sm:$0xff]
    %v153 = vld [vmem:[#allocation4 + $0x1d0] sm:$0xff]
    %v154 = vld [vmem:[#allocation4 + $0x1d8] sm:$0xff]
    %v155 = vld [vmem:[#allocation4 + $0x1e0] sm:$0xff]
    %v156 = vld [vmem:[#allocation4 + $0x1e8] sm:$0xff]
    %v157 = vld [vmem:[#allocation4 + $0x1f0] sm:$0xff]
    %v158 = vld [vmem:[#allocation4 + $0x1f8] sm:$0xff]
    %v159 = vld [vmem:[#allocation6] sm:$0xf]
    %v161 = vlaneseq
    %v162 = vshrl.u32 %v161, 7
    %v163 = vsub.s32 0, %v162
    %v164 = vrot.slane %v159, %v163
    %v165 = vlaneseq
    %v166 = vshrl.u32 %v165, 7
    %v167 = vsub.s32 1, %v166
    %v168 = vrot.slane %v159, %v167
    %v169 = vlaneseq
    %v170 = vshrl.u32 %v169, 7
    %v171 = vsub.s32 2, %v170
    %v172 = vrot.slane %v159, %v171
    %v173 = vlaneseq
    %v174 = vshrl.u32 %v173, 7
    %v175 = vsub.s32 3, %v174
    %v176 = vrot.slane %v159, %v175
    %v245 = vunpack.c.l.b16 %v95
    %v246 = vunpack.c.h.b16 %v95
    %v247 = vunpack.c.l.b16 %v96
    %v248 = vunpack.c.h.b16 %v96
    %v249 = vunpack.c.l.b16 %v97
    %v250 = vunpack.c.h.b16 %v97
    %v251 = vunpack.c.l.b16 %v98
    %v252 = vunpack.c.h.b16 %v98
    %v253 = vunpack.c.l.b16 %v99
    %v254 = vunpack.c.h.b16 %v99
    %v255 = vunpack.c.l.b16 %v100
    %v256 = vunpack.c.h.b16 %v100
    %v257 = vunpack.c.l.b16 %v101
    %v258 = vunpack.c.h.b16 %v101
    %v259 = vunpack.c.l.b16 %v102
    %v260 = vunpack.c.h.b16 %v102
    %v261 = vunpack.c.l.b16 %v103
    %v262 = vunpack.c.h.b16 %v103
    %v263 = vunpack.c.l.b16 %v104
    %v264 = vunpack.c.h.b16 %v104
    %v265 = vunpack.c.l.b16 %v105
    %v266 = vunpack.c.h.b16 %v105
    %v267 = vunpack.c.l.b16 %v106
    %v268 = vunpack.c.h.b16 %v106
    %v269 = vunpack.c.l.b16 %v107
    %v270 = vunpack.c.h.b16 %v107
    %v271 = vunpack.c.l.b16 %v108
    %v272 = vunpack.c.h.b16 %v108
    %v273 = vunpack.c.l.b16 %v109
    %v274 = vunpack.c.h.b16 %v109
    %v275 = vunpack.c.l.b16 %v110
    %v276 = vunpack.c.h.b16 %v110
    %v277 = vunpack.c.l.b16 %v111
    %v278 = vunpack.c.h.b16 %v111
    %v279 = vunpack.c.l.b16 %v112
    %v280 = vunpack.c.h.b16 %v112
    %v281 = vunpack.c.l.b16 %v113
    %v282 = vunpack.c.h.b16 %v113
    %v283 = vunpack.c.l.b16 %v114
    %v284 = vunpack.c.h.b16 %v114
    %v285 = vunpack.c.l.b16 %v115
    %v286 = vunpack.c.h.b16 %v115
    %v287 = vunpack.c.l.b16 %v116
    %v288 = vunpack.c.h.b16 %v116
    %v289 = vunpack.c.l.b16 %v117
    %v290 = vunpack.c.h.b16 %v117
    %v291 = vunpack.c.l.b16 %v118
    %v292 = vunpack.c.h.b16 %v118
    %v293 = vunpack.c.l.b16 %v119
    %v294 = vunpack.c.h.b16 %v119
    %v295 = vunpack.c.l.b16 %v120
    %v296 = vunpack.c.h.b16 %v120
    %v297 = vunpack.c.l.b16 %v121
    %v298 = vunpack.c.h.b16 %v121
    %v299 = vunpack.c.l.b16 %v122
    %v300 = vunpack.c.h.b16 %v122
    %v301 = vunpack.c.l.b16 %v123
    %v302 = vunpack.c.h.b16 %v123
    %v303 = vunpack.c.l.b16 %v124
    %v304 = vunpack.c.h.b16 %v124
    %v305 = vunpack.c.l.b16 %v125
    %v306 = vunpack.c.h.b16 %v125
    %v307 = vunpack.c.l.b16 %v126
    %v308 = vunpack.c.h.b16 %v126
    %v309 = vunpack.c.l.b16 %v127
    %v310 = vunpack.c.h.b16 %v127
    %v311 = vunpack.c.l.b16 %v128
    %v312 = vunpack.c.h.b16 %v128
    %v313 = vunpack.c.l.b16 %v129
    %v314 = vunpack.c.h.b16 %v129
    %v315 = vunpack.c.l.b16 %v130
    %v316 = vunpack.c.h.b16 %v130
    %v317 = vunpack.c.l.b16 %v131
    %v318 = vunpack.c.h.b16 %v131
    %v319 = vunpack.c.l.b16 %v132
    %v320 = vunpack.c.h.b16 %v132
    %v321 = vunpack.c.l.b16 %v133
    %v322 = vunpack.c.h.b16 %v133
    %v323 = vunpack.c.l.b16 %v134
    %v324 = vunpack.c.h.b16 %v134
    %v325 = vunpack.c.l.b16 %v135
    %v326 = vunpack.c.h.b16 %v135
    %v327 = vunpack.c.l.b16 %v136
    %v328 = vunpack.c.h.b16 %v136
    %v329 = vunpack.c.l.b16 %v137
    %v330 = vunpack.c.h.b16 %v137
    %v331 = vunpack.c.l.b16 %v138
    %v332 = vunpack.c.h.b16 %v138
    %v333 = vunpack.c.l.b16 %v139
    %v334 = vunpack.c.h.b16 %v139
    %v335 = vunpack.c.l.b16 %v140
    %v336 = vunpack.c.h.b16 %v140
    %v337 = vunpack.c.l.b16 %v141
    %v338 = vunpack.c.h.b16 %v141
    %v339 = vunpack.c.l.b16 %v142
    %v340 = vunpack.c.h.b16 %v142
    %v341 = vunpack.c.l.b16 %v143
    %v342 = vunpack.c.h.b16 %v143
    %v343 = vunpack.c.l.b16 %v144
    %v344 = vunpack.c.h.b16 %v144
    %v345 = vunpack.c.l.b16 %v145
    %v346 = vunpack.c.h.b16 %v145
    %v347 = vunpack.c.l.b16 %v146
    %v348 = vunpack.c.h.b16 %v146
    %v349 = vunpack.c.l.b16 %v147
    %v350 = vunpack.c.h.b16 %v147
    %v351 = vunpack.c.l.b16 %v148
    %v352 = vunpack.c.h.b16 %v148
    %v353 = vunpack.c.l.b16 %v149
    %v354 = vunpack.c.h.b16 %v149
    %v355 = vunpack.c.l.b16 %v150
    %v356 = vunpack.c.h.b16 %v150
    %v357 = vunpack.c.l.b16 %v151
    %v358 = vunpack.c.h.b16 %v151
    %v359 = vunpack.c.l.b16 %v152
    %v360 = vunpack.c.h.b16 %v152
    %v361 = vunpack.c.l.b16 %v153
    %v362 = vunpack.c.h.b16 %v153
    %v363 = vunpack.c.l.b16 %v154
    %v364 = vunpack.c.h.b16 %v154
    %v365 = vunpack.c.l.b16 %v155
    %v366 = vunpack.c.h.b16 %v155
    %v367 = vunpack.c.l.b16 %v156
    %v368 = vunpack.c.h.b16 %v156
    %v369 = vunpack.c.l.b16 %v157
    %v370 = vunpack.c.h.b16 %v157
    %v371 = vunpack.c.l.b16 %v158
    %v372 = vunpack.c.h.b16 %v158
    %v373 = vpack.c.b16 %v249, %v245
    %v374 = vpack.c.b16 %v250, %v246
    %v375 = vpack.c.b16 %v251, %v247
    %v376 = vpack.c.b16 %v252, %v248
    %v377 = vpack.c.b16 %v257, %v253
    %v378 = vpack.c.b16 %v258, %v254
    %v379 = vpack.c.b16 %v259, %v255
    %v380 = vpack.c.b16 %v260, %v256
    %v381 = vpack.c.b16 %v265, %v261
    %v382 = vpack.c.b16 %v266, %v262
    %v383 = vpack.c.b16 %v267, %v263
    %v384 = vpack.c.b16 %v268, %v264
    %v385 = vpack.c.b16 %v273, %v269
    %v386 = vpack.c.b16 %v274, %v270
    %v387 = vpack.c.b16 %v275, %v271
    %v388 = vpack.c.b16 %v276, %v272
    %v389 = vpack.c.b16 %v281, %v277
    %v390 = vpack.c.b16 %v282, %v278
    %v391 = vpack.c.b16 %v283, %v279
    %v392 = vpack.c.b16 %v284, %v280
    %v393 = vpack.c.b16 %v289, %v285
    %v394 = vpack.c.b16 %v290, %v286
    %v395 = vpack.c.b16 %v291, %v287
    %v396 = vpack.c.b16 %v292, %v288
    %v397 = vpack.c.b16 %v297, %v293
    %v398 = vpack.c.b16 %v298, %v294
    %v399 = vpack.c.b16 %v299, %v295
    %v400 = vpack.c.b16 %v300, %v296
    %v401 = vpack.c.b16 %v305, %v301
    %v402 = vpack.c.b16 %v306, %v302
    %v403 = vpack.c.b16 %v307, %v303
    %v404 = vpack.c.b16 %v308, %v304
    %v405 = vpack.c.b16 %v313, %v309
    %v406 = vpack.c.b16 %v314, %v310
    %v407 = vpack.c.b16 %v315, %v311
    %v408 = vpack.c.b16 %v316, %v312
    %v409 = vpack.c.b16 %v321, %v317
    %v410 = vpack.c.b16 %v322, %v318
    %v411 = vpack.c.b16 %v323, %v319
    %v412 = vpack.c.b16 %v324, %v320
    %v413 = vpack.c.b16 %v329, %v325
    %v414 = vpack.c.b16 %v330, %v326
    %v415 = vpack.c.b16 %v331, %v327
    %v416 = vpack.c.b16 %v332, %v328
    %v417 = vpack.c.b16 %v337, %v333
    %v418 = vpack.c.b16 %v338, %v334
    %v419 = vpack.c.b16 %v339, %v335
    %v420 = vpack.c.b16 %v340, %v336
    %v421 = vpack.c.b16 %v345, %v341
    %v422 = vpack.c.b16 %v346, %v342
    %v423 = vpack.c.b16 %v347, %v343
    %v424 = vpack.c.b16 %v348, %v344
    %v425 = vpack.c.b16 %v353, %v349
    %v426 = vpack.c.b16 %v354, %v350
    %v427 = vpack.c.b16 %v355, %v351
    %v428 = vpack.c.b16 %v356, %v352
    %v429 = vpack.c.b16 %v361, %v357
    %v430 = vpack.c.b16 %v362, %v358
    %v431 = vpack.c.b16 %v363, %v359
    %v432 = vpack.c.b16 %v364, %v360
    %v433 = vpack.c.b16 %v369, %v365
    %v434 = vpack.c.b16 %v370, %v366
    %v435 = vpack.c.b16 %v371, %v367
    %v436 = vpack.c.b16 %v372, %v368
    %501 = vmatprep.subr.bf16.mxu0 %v374
    %502 = vmatpush1.bf16.msra.mxu0 %v373
    %503 = vmatprep.subr.bf16.mxu0 %v378
    %504 = vmatpush1.bf16.msra.mxu0 %v377
    %505 = vmatprep.subr.bf16.mxu0 %v382
    %506 = vmatpush1.bf16.msra.mxu0 %v381
    %507 = vmatprep.subr.bf16.mxu0 %v386
    %508 = vmatpush1.bf16.msra.mxu0 %v385
    %509 = vmatprep.subr.bf16.mxu0 %v390
    %510 = vmatpush1.bf16.msra.mxu0 %v389
    %511 = vmatprep.subr.bf16.mxu0 %v394
    %512 = vmatpush1.bf16.msra.mxu0 %v393
    %513 = vmatprep.subr.bf16.mxu0 %v398
    %514 = vmatpush1.bf16.msra.mxu0 %v397
    %515 = vmatprep.subr.bf16.mxu0 %v402
    %516 = vmatpush1.bf16.msra.mxu0 %v401
    %517 = vmatprep.subr.bf16.mxu0 %v406
    %518 = vmatpush1.bf16.msra.mxu0 %v405
    %519 = vmatprep.subr.bf16.mxu0 %v410
    %520 = vmatpush1.bf16.msra.mxu0 %v409
    %521 = vmatprep.subr.bf16.mxu0 %v414
    %522 = vmatpush1.bf16.msra.mxu0 %v413
    %523 = vmatprep.subr.bf16.mxu0 %v418
    %524 = vmatpush1.bf16.msra.mxu0 %v417
    %525 = vmatprep.subr.bf16.mxu0 %v422
    %526 = vmatpush1.bf16.msra.mxu0 %v421
    %527 = vmatprep.subr.bf16.mxu0 %v426
    %528 = vmatpush1.bf16.msra.mxu0 %v425
    %529 = vmatprep.subr.bf16.mxu0 %v430
    %530 = vmatpush1.bf16.msra.mxu0 %v429
    %531 = vmatprep.subr.bf16.mxu0 %v434
    %532 = vmatpush1.bf16.msra.mxu0 %v433
    %533 = vmatprep.mubr.bf16.mxu0 %v94
    %534 = vmatmul.mubr.bf16.gmra.mrb[0].mxu0 %v93
    %v535 = vpop.f32.mrb[0].mxu0
    %v536 = vadd.f32 %v164, %v535
    %v537 = vpop.f32.mrb[0].mxu0
    %v538 = vadd.f32 %v168, %v537
    %v539 = vpop.f32.mrb[0].mxu0
    %v540 = vpop.f32.mrb[0].mxu0
    %541 = vdwg.mxu0
    %542 = vmatprep.subr.bf16.mxu0 %v376
    %543 = vmatpush1.bf16.msra.mxu0 %v375
    %544 = vmatprep.subr.bf16.mxu0 %v380
    %545 = vmatpush1.bf16.msra.mxu0 %v379
    %546 = vmatprep.subr.bf16.mxu0 %v384
    %547 = vmatpush1.bf16.msra.mxu0 %v383
    %548 = vmatprep.subr.bf16.mxu0 %v388
    %549 = vmatpush1.bf16.msra.mxu0 %v387
    %550 = vmatprep.subr.bf16.mxu0 %v392
    %551 = vmatpush1.bf16.msra.mxu0 %v391
    %552 = vmatprep.subr.bf16.mxu0 %v396
    %553 = vmatpush1.bf16.msra.mxu0 %v395
    %554 = vmatprep.subr.bf16.mxu0 %v400
    %555 = vmatpush1.bf16.msra.mxu0 %v399
    %556 = vmatprep.subr.bf16.mxu0 %v404
    %557 = vmatpush1.bf16.msra.mxu0 %v403
    %558 = vmatprep.subr.bf16.mxu0 %v408
    %559 = vmatpush1.bf16.msra.mxu0 %v407
    %560 = vmatprep.subr.bf16.mxu0 %v412
    %561 = vmatpush1.bf16.msra.mxu0 %v411
    %562 = vmatprep.subr.bf16.mxu0 %v416
    %563 = vmatpush1.bf16.msra.mxu0 %v415
    %564 = vmatprep.subr.bf16.mxu0 %v420
    %565 = vmatpush1.bf16.msra.mxu0 %v419
    %566 = vmatprep.subr.bf16.mxu0 %v424
    %567 = vmatpush1.bf16.msra.mxu0 %v423
    %568 = vmatprep.subr.bf16.mxu0 %v428
    %569 = vmatpush1.bf16.msra.mxu0 %v427
    %570 = vmatprep.subr.bf16.mxu0 %v432
    %571 = vmatpush1.bf16.msra.mxu0 %v431
    %572 = vmatprep.subr.bf16.mxu0 %v436
    %573 = vmatpush1.bf16.msra.mxu0 %v435
    %574 = vmatprep.mubr.bf16.mxu0 %v94
    %575 = vmatmul.mubr.bf16.gmra.mrb[0].mxu0 %v93
    %v576 = vpop.f32.mrb[0].mxu0
    %v577 = vadd.f32 %v172, %v576
    %v578 = vpop.f32.mrb[0].mxu0
    %v579 = vadd.f32 %v176, %v578
    %v580 = vpop.f32.mrb[0].mxu0
    %v581 = vpop.f32.mrb[0].mxu0
    %582 = vdwg.mxu0
    %v583 = vmax.f32 %v536, 0.0
    %v584 = vmax.f32 %v538, 0.0
    %v585 = vmax.f32 %v577, 0.0
    %v586 = vmax.f32 %v579, 0.0
    %v587 = vpack.c.bf16 %v583, %v583
    %v588 = vpack.c.bf16 %v584, %v584
    %v589 = vpack.c.bf16 %v585, %v585
    %v590 = vpack.c.bf16 %v586, %v586
    %v591 = vld [vmem:[#allocation7] sm:$0xf]
    %v592 = vld [vmem:[#allocation7 + $0x4] sm:$0xf]
    %v593 = vld [vmem:[#allocation7 + $0x8] sm:$0xf]
    %v594 = vld [vmem:[#allocation7 + $0xc] sm:$0xf]
    %v595 = vld [vmem:[#allocation7 + $0x10] sm:$0xf]
    %v596 = vld [vmem:[#allocation7 + $0x14] sm:$0xf]
    %v597 = vld [vmem:[#allocation7 + $0x18] sm:$0xf]
    %v598 = vld [vmem:[#allocation7 + $0x1c] sm:$0xf]
    %v599 = vld [vmem:[#allocation7 + $0x20] sm:$0xf]
    %v600 = vld [vmem:[#allocation7 + $0x24] sm:$0xf]
    %v601 = vld [vmem:[#allocation7 + $0x28] sm:$0xf]
    %v602 = vld [vmem:[#allocation7 + $0x2c] sm:$0xf]
    %v603 = vld [vmem:[#allocation7 + $0x30] sm:$0xf]
    %v604 = vld [vmem:[#allocation7 + $0x34] sm:$0xf]
    %v605 = vld [vmem:[#allocation7 + $0x38] sm:$0xf]
    %v606 = vld [vmem:[#allocation7 + $0x3c] sm:$0xf]
    %v607 = vld [vmem:[#allocation7 + $0x40] sm:$0xf]
    %v608 = vld [vmem:[#allocation7 + $0x44] sm:$0xf]
    %v609 = vld [vmem:[#allocation7 + $0x48] sm:$0xf]
    %v610 = vld [vmem:[#allocation7 + $0x4c] sm:$0xf]
    %v611 = vld [vmem:[#allocation7 + $0x50] sm:$0xf]
    %v612 = vld [vmem:[#allocation7 + $0x54] sm:$0xf]
    %v613 = vld [vmem:[#allocation7 + $0x58] sm:$0xf]
    %v614 = vld [vmem:[#allocation7 + $0x5c] sm:$0xf]
    %v615 = vld [vmem:[#allocation7 + $0x60] sm:$0xf]
    %v616 = vld [vmem:[#allocation7 + $0x64] sm:$0xf]
    %v617 = vld [vmem:[#allocation7 + $0x68] sm:$0xf]
    %v618 = vld [vmem:[#allocation7 + $0x6c] sm:$0xf]
    %v619 = vld [vmem:[#allocation7 + $0x70] sm:$0xf]
    %v620 = vld [vmem:[#allocation7 + $0x74] sm:$0xf]
    %v621 = vld [vmem:[#allocation7 + $0x78] sm:$0xf]
    %v622 = vld [vmem:[#allocation7 + $0x7c] sm:$0xf]
    %v623 = vld [vmem:[#allocation7 + $0x80] sm:$0xf]
    %v624 = vld [vmem:[#allocation7 + $0x84] sm:$0xf]
    %v625 = vld [vmem:[#allocation7 + $0x88] sm:$0xf]
    %v626 = vld [vmem:[#allocation7 + $0x8c] sm:$0xf]
    %v627 = vld [vmem:[#allocation7 + $0x90] sm:$0xf]
    %v628 = vld [vmem:[#allocation7 + $0x94] sm:$0xf]
    %v629 = vld [vmem:[#allocation7 + $0x98] sm:$0xf]
    %v630 = vld [vmem:[#allocation7 + $0x9c] sm:$0xf]
    %v631 = vld [vmem:[#allocation7 + $0xa0] sm:$0xf]
    %v632 = vld [vmem:[#allocation7 + $0xa4] sm:$0xf]
    %v633 = vld [vmem:[#allocation7 + $0xa8] sm:$0xf]
    %v634 = vld [vmem:[#allocation7 + $0xac] sm:$0xf]
    %v635 = vld [vmem:[#allocation7 + $0xb0] sm:$0xf]
    %v636 = vld [vmem:[#allocation7 + $0xb4] sm:$0xf]
    %v637 = vld [vmem:[#allocation7 + $0xb8] sm:$0xf]
    %v638 = vld [vmem:[#allocation7 + $0xbc] sm:$0xf]
    %v639 = vld [vmem:[#allocation7 + $0xc0] sm:$0xf]
    %v640 = vld [vmem:[#allocation7 + $0xc4] sm:$0xf]
    %v641 = vld [vmem:[#allocation7 + $0xc8] sm:$0xf]
    %v642 = vld [vmem:[#allocation7 + $0xcc] sm:$0xf]
    %v643 = vld [vmem:[#allocation7 + $0xd0] sm:$0xf]
    %v644 = vld [vmem:[#allocation7 + $0xd4] sm:$0xf]
    %v645 = vld [vmem:[#allocation7 + $0xd8] sm:$0xf]
    %v646 = vld [vmem:[#allocation7 + $0xdc] sm:$0xf]
    %v647 = vld [vmem:[#allocation7 + $0xe0] sm:$0xf]
    %v648 = vld [vmem:[#allocation7 + $0xe4] sm:$0xf]
    %v649 = vld [vmem:[#allocation7 + $0xe8] sm:$0xf]
    %v650 = vld [vmem:[#allocation7 + $0xec] sm:$0xf]
    %v651 = vld [vmem:[#allocation7 + $0xf0] sm:$0xf]
    %v652 = vld [vmem:[#allocation7 + $0xf4] sm:$0xf]
    %v653 = vld [vmem:[#allocation7 + $0xf8] sm:$0xf]
    %v654 = vld [vmem:[#allocation7 + $0xfc] sm:$0xf]
    %v655 = vld [vmem:[%s4] sm:$0x1]
    %v657 = vlaneseq
    %v658 = vshrl.u32 %v657, 7
    %v659 = vsub.s32 0, %v658
    %v660 = vrot.slane %v655, %v659
    %v726 = vunpack.c.l.b16 %v591
    %v727 = vunpack.c.l.b16 %v592
    %v728 = vunpack.c.l.b16 %v593
    %v729 = vunpack.c.l.b16 %v594
    %v730 = vunpack.c.l.b16 %v595
    %v731 = vunpack.c.l.b16 %v596
    %v732 = vunpack.c.l.b16 %v597
    %v733 = vunpack.c.l.b16 %v598
    %v734 = vunpack.c.l.b16 %v599
    %v735 = vunpack.c.l.b16 %v600
    %v736 = vunpack.c.l.b16 %v601
    %v737 = vunpack.c.l.b16 %v602
    %v738 = vunpack.c.l.b16 %v603
    %v739 = vunpack.c.l.b16 %v604
    %v740 = vunpack.c.l.b16 %v605
    %v741 = vunpack.c.l.b16 %v606
    %v742 = vunpack.c.l.b16 %v607
    %v743 = vunpack.c.l.b16 %v608
    %v744 = vunpack.c.l.b16 %v609
    %v745 = vunpack.c.l.b16 %v610
    %v746 = vunpack.c.l.b16 %v611
    %v747 = vunpack.c.l.b16 %v612
    %v748 = vunpack.c.l.b16 %v613
    %v749 = vunpack.c.l.b16 %v614
    %v750 = vunpack.c.l.b16 %v615
    %v751 = vunpack.c.l.b16 %v616
    %v752 = vunpack.c.l.b16 %v617
    %v753 = vunpack.c.l.b16 %v618
    %v754 = vunpack.c.l.b16 %v619
    %v755 = vunpack.c.l.b16 %v620
    %v756 = vunpack.c.l.b16 %v621
    %v757 = vunpack.c.l.b16 %v622
    %v758 = vunpack.c.l.b16 %v623
    %v759 = vunpack.c.l.b16 %v624
    %v760 = vunpack.c.l.b16 %v625
    %v761 = vunpack.c.l.b16 %v626
    %v762 = vunpack.c.l.b16 %v627
    %v763 = vunpack.c.l.b16 %v628
    %v764 = vunpack.c.l.b16 %v629
    %v765 = vunpack.c.l.b16 %v630
    %v766 = vunpack.c.l.b16 %v631
    %v767 = vunpack.c.l.b16 %v632
    %v768 = vunpack.c.l.b16 %v633
    %v769 = vunpack.c.l.b16 %v634
    %v770 = vunpack.c.l.b16 %v635
    %v771 = vunpack.c.l.b16 %v636
    %v772 = vunpack.c.l.b16 %v637
    %v773 = vunpack.c.l.b16 %v638
    %v774 = vunpack.c.l.b16 %v639
    %v775 = vunpack.c.l.b16 %v640
    %v776 = vunpack.c.l.b16 %v641
    %v777 = vunpack.c.l.b16 %v642
    %v778 = vunpack.c.l.b16 %v643
    %v779 = vunpack.c.l.b16 %v644
    %v780 = vunpack.c.l.b16 %v645
    %v781 = vunpack.c.l.b16 %v646
    %v782 = vunpack.c.l.b16 %v647
    %v783 = vunpack.c.l.b16 %v648
    %v784 = vunpack.c.l.b16 %v649
    %v785 = vunpack.c.l.b16 %v650
    %v786 = vunpack.c.l.b16 %v651
    %v787 = vunpack.c.l.b16 %v652
    %v788 = vunpack.c.l.b16 %v653
    %v789 = vunpack.c.l.b16 %v654
    %v790 = vpack.c.b16 %v727, %v726
    %v791 = vpack.c.b16 %v729, %v728
    %v792 = vpack.c.b16 %v731, %v730
    %v793 = vpack.c.b16 %v733, %v732
    %v794 = vpack.c.b16 %v735, %v734
    %v795 = vpack.c.b16 %v737, %v736
    %v796 = vpack.c.b16 %v739, %v738
    %v797 = vpack.c.b16 %v741, %v740
    %v798 = vpack.c.b16 %v743, %v742
    %v799 = vpack.c.b16 %v745, %v744
    %v800 = vpack.c.b16 %v747, %v746
    %v801 = vpack.c.b16 %v749, %v748
    %v802 = vpack.c.b16 %v751, %v750
    %v803 = vpack.c.b16 %v753, %v752
    %v804 = vpack.c.b16 %v755, %v754
    %v805 = vpack.c.b16 %v757, %v756
    %v806 = vpack.c.b16 %v759, %v758
    %v807 = vpack.c.b16 %v761, %v760
    %v808 = vpack.c.b16 %v763, %v762
    %v809 = vpack.c.b16 %v765, %v764
    %v810 = vpack.c.b16 %v767, %v766
    %v811 = vpack.c.b16 %v769, %v768
    %v812 = vpack.c.b16 %v771, %v770
    %v813 = vpack.c.b16 %v773, %v772
    %v814 = vpack.c.b16 %v775, %v774
    %v815 = vpack.c.b16 %v777, %v776
    %v816 = vpack.c.b16 %v779, %v778
    %v817 = vpack.c.b16 %v781, %v780
    %v818 = vpack.c.b16 %v783, %v782
    %v819 = vpack.c.b16 %v785, %v784
    %v820 = vpack.c.b16 %v787, %v786
    %v821 = vpack.c.b16 %v789, %v788
    %854 = vmatprep.subr.bf16.mxu0 0
    %855 = vmatpush1.bf16.msra.mxu0 %v790
    %856 = vmatprep.subr.bf16.mxu0 0
    %857 = vmatpush1.bf16.msra.mxu0 %v791
    %858 = vmatprep.subr.bf16.mxu0 0
    %859 = vmatpush1.bf16.msra.mxu0 %v792
    %860 = vmatprep.subr.bf16.mxu0 0
    %861 = vmatpush1.bf16.msra.mxu0 %v793
    %862 = vmatprep.subr.bf16.mxu0 0
    %863 = vmatpush1.bf16.msra.mxu0 %v794
    %864 = vmatprep.subr.bf16.mxu0 0
    %865 = vmatpush1.bf16.msra.mxu0 %v795
    %866 = vmatprep.subr.bf16.mxu0 0
    %867 = vmatpush1.bf16.msra.mxu0 %v796
    %868 = vmatprep.subr.bf16.mxu0 0
    %869 = vmatpush1.bf16.msra.mxu0 %v797
    %870 = vmatprep.subr.bf16.mxu0 0
    %871 = vmatpush1.bf16.msra.mxu0 %v798
    %872 = vmatprep.subr.bf16.mxu0 0
    %873 = vmatpush1.bf16.msra.mxu0 %v799
    %874 = vmatprep.subr.bf16.mxu0 0
    %875 = vmatpush1.bf16.msra.mxu0 %v800
    %876 = vmatprep.subr.bf16.mxu0 0
    %877 = vmatpush1.bf16.msra.mxu0 %v801
    %878 = vmatprep.subr.bf16.mxu0 0
    %879 = vmatpush1.bf16.msra.mxu0 %v802
    %880 = vmatprep.subr.bf16.mxu0 0
    %881 = vmatpush1.bf16.msra.mxu0 %v803
    %882 = vmatprep.subr.bf16.mxu0 0
    %883 = vmatpush1.bf16.msra.mxu0 %v804
    %884 = vmatprep.subr.bf16.mxu0 0
    %885 = vmatpush1.bf16.msra.mxu0 %v805
    %886 = vmatprep.mubr.bf16.mxu0 %v588
    %887 = vmatmul.mubr.bf16.gmra.mrb[0].mxu0 %v587
    %v888 = vpop.f32.mrb[0].mxu0
    %v889 = vadd.f32 %v660, %v888
    %v890 = vpop.f32.mrb[0].mxu0
    %v891 = vpop.f32.mrb[0].mxu0
    %v892 = vpop.f32.mrb[0].mxu0
    %893 = vdwg.mxu0
    %894 = vmatprep.subr.bf16.mxu0 0
    %895 = vmatpush1.bf16.msra.mxu0 %v806
    %896 = vmatprep.subr.bf16.mxu0 0
    %897 = vmatpush1.bf16.msra.mxu0 %v807
    %898 = vmatprep.subr.bf16.mxu0 0
    %899 = vmatpush1.bf16.msra.mxu0 %v808
    %900 = vmatprep.subr.bf16.mxu0 0
    %901 = vmatpush1.bf16.msra.mxu0 %v809
    %902 = vmatprep.subr.bf16.mxu0 0
    %903 = vmatpush1.bf16.msra.mxu0 %v810
    %904 = vmatprep.subr.bf16.mxu0 0
    %905 = vmatpush1.bf16.msra.mxu0 %v811
    %906 = vmatprep.subr.bf16.mxu0 0
    %907 = vmatpush1.bf16.msra.mxu0 %v812
    %908 = vmatprep.subr.bf16.mxu0 0
    %909 = vmatpush1.bf16.msra.mxu0 %v813
    %910 = vmatprep.subr.bf16.mxu0 0
    %911 = vmatpush1.bf16.msra.mxu0 %v814
    %912 = vmatprep.subr.bf16.mxu0 0
    %913 = vmatpush1.bf16.msra.mxu0 %v815
    %914 = vmatprep.subr.bf16.mxu0 0
    %915 = vmatpush1.bf16.msra.mxu0 %v816
    %916 = vmatprep.subr.bf16.mxu0 0
    %917 = vmatpush1.bf16.msra.mxu0 %v817
    %918 = vmatprep.subr.bf16.mxu0 0
    %919 = vmatpush1.bf16.msra.mxu0 %v818
    %920 = vmatprep.subr.bf16.mxu0 0
    %921 = vmatpush1.bf16.msra.mxu0 %v819
    %922 = vmatprep.subr.bf16.mxu0 0
    %923 = vmatpush1.bf16.msra.mxu0 %v820
    %924 = vmatprep.subr.bf16.mxu0 0
    %925 = vmatpush1.bf16.msra.mxu0 %v821
    %926 = vmatprep.mubr.bf16.mxu0 %v590
    %927 = vmatmul.mubr.bf16.gmra.mrb[0].mxu0 %v589
    %v928 = vpop.f32.mrb[0].mxu0
    %v929 = vadd.f32 %v889, %v928
    %v930 = vpop.f32.mrb[0].mxu0
    %v931 = vpop.f32.mrb[0].mxu0
    %v932 = vpop.f32.mrb[0].mxu0
    %933 = vdwg.mxu0
    %v934 = vmax.f32 %v929, 0.0
    %v935 = vpack.c.bf16 %v934, %v934
    %v936 = vld [vmem:[#allocation9] sm:$0xf]
    %v937 = vld [vmem:[#allocation9 + $0x4] sm:$0xf]
    %v938 = vld [vmem:[#allocation9 + $0x8] sm:$0xf]
    %v939 = vld [vmem:[#allocation9 + $0xc] sm:$0xf]
    %v940 = vld [vmem:[#allocation9 + $0x10] sm:$0xf]
    %v941 = vld [vmem:[#allocation9 + $0x14] sm:$0xf]
    %v942 = vld [vmem:[#allocation9 + $0x18] sm:$0xf]
    %v943 = vld [vmem:[#allocation9 + $0x1c] sm:$0xf]
    %v944 = vld [vmem:[#allocation9 + $0x20] sm:$0xf]
    %v945 = vld [vmem:[#allocation9 + $0x24] sm:$0xf]
    %v946 = vld [vmem:[#allocation9 + $0x28] sm:$0xf]
    %v947 = vld [vmem:[#allocation9 + $0x2c] sm:$0xf]
    %v948 = vld [vmem:[#allocation9 + $0x30] sm:$0xf]
    %v949 = vld [vmem:[#allocation9 + $0x34] sm:$0xf]
    %v950 = vld [vmem:[#allocation9 + $0x38] sm:$0xf]
    %v951 = vld [vmem:[#allocation9 + $0x3c] sm:$0xf]
    %v952 = vld [vmem:[%s6] sm:$0x1]
    %v954 = vlaneseq
    %v955 = vshrl.u32 %v954, 7
    %v956 = vsub.s32 0, %v955
    %v957 = vrot.slane %v952, %v956
    %v975 = vunpack.c.l.b16 %v936
    %v976 = vunpack.c.l.b16 %v937
    %v977 = vunpack.c.l.b16 %v938
    %v978 = vunpack.c.l.b16 %v939
    %v979 = vunpack.c.l.b16 %v940
    %v980 = vunpack.c.l.b16 %v941
    %v981 = vunpack.c.l.b16 %v942
    %v982 = vunpack.c.l.b16 %v943
    %v983 = vunpack.c.l.b16 %v944
    %v984 = vunpack.c.l.b16 %v945
    %v985 = vunpack.c.l.b16 %v946
    %v986 = vunpack.c.l.b16 %v947
    %v987 = vunpack.c.l.b16 %v948
    %v988 = vunpack.c.l.b16 %v949
    %v989 = vunpack.c.l.b16 %v950
    %v990 = vunpack.c.l.b16 %v951
    %v991 = vpack.c.b16 %v976, %v975
    %v992 = vpack.c.b16 %v978, %v977
    %v993 = vpack.c.b16 %v980, %v979
    %v994 = vpack.c.b16 %v982, %v981
    %v995 = vpack.c.b16 %v984, %v983
    %v996 = vpack.c.b16 %v986, %v985
    %v997 = vpack.c.b16 %v988, %v987
    %v998 = vpack.c.b16 %v990, %v989
    %1007 = vmatprep.subr.bf16.mxu0 0
    %1008 = vmatpush1.bf16.msra.mxu0 %v991
    %1009 = vmatprep.subr.bf16.mxu0 0
    %1010 = vmatpush1.bf16.msra.mxu0 %v992
    %1011 = vmatprep.subr.bf16.mxu0 0
    %1012 = vmatpush1.bf16.msra.mxu0 %v993
    %1013 = vmatprep.subr.bf16.mxu0 0
    %1014 = vmatpush1.bf16.msra.mxu0 %v994
    %1015 = vmatprep.subr.bf16.mxu0 0
    %1016 = vmatpush1.bf16.msra.mxu0 %v995
    %1017 = vmatprep.subr.bf16.mxu0 0
    %1018 = vmatpush1.bf16.msra.mxu0 %v996
    %1019 = vmatprep.subr.bf16.mxu0 0
    %1020 = vmatpush1.bf16.msra.mxu0 %v997
    %1021 = vmatprep.subr.bf16.mxu0 0
    %1022 = vmatpush1.bf16.msra.mxu0 %v998
    %1023 = vmatprep.subr.bf16.mxu0 0
    %1024 = vmatpush1.bf16.msra.mxu0 0
    %1025 = vmatprep.subr.bf16.mxu0 0
    %1026 = vmatpush1.bf16.msra.mxu0 0
    %1027 = vmatprep.subr.bf16.mxu0 0
    %1028 = vmatpush1.bf16.msra.mxu0 0
    %1029 = vmatprep.subr.bf16.mxu0 0
    %1030 = vmatpush1.bf16.msra.mxu0 0
    %1031 = vmatprep.subr.bf16.mxu0 0
    %1032 = vmatpush1.bf16.msra.mxu0 0
    %1033 = vmatprep.subr.bf16.mxu0 0
    %1034 = vmatpush1.bf16.msra.mxu0 0
    %1035 = vmatprep.subr.bf16.mxu0 0
    %1036 = vmatpush1.bf16.msra.mxu0 0
    %1037 = vmatprep.subr.bf16.mxu0 0
    %1038 = vmatpush1.bf16.msra.mxu0 0
    %1039 = vmatprep.mubr.bf16.mxu0 0
    %1040 = vmatmul.mubr.bf16.gmra.mrb[0].mxu0 %v935
    %v1041 = vpop.f32.mrb[0].mxu0
    %v1042 = vadd.f32 %v957, %v1041
    %v1043 = vpop.f32.mrb[0].mxu0
    %v1044 = vpop.f32.mrb[0].mxu0
    %v1045 = vpop.f32.mrb[0].mxu0
    %1046 = vdwg.mxu0
    %v1047 = vpack.c.bf16 %v1042, %v1042
    %1048 = vst [vmem:[%s7] sm:$0xf] %v1047
    // Predicated region
    $region50: #{mlp_forward.1} parent=1 // pred_check
      _
    $region51: #{mlp_forward.1} parent=1 // pred_check_branch
      %1050 = sbr.rel (0) target = $region53
    $region52: #{mlp_forward.1} parent=1 // pred_region
      _
    $region53: #{mlp_forward.1} parent=1 // pred_fallthru
      _
    // Predicated region
    $region54: #{mlp_forward.1} parent=1 // pred_check
      _
    $region55: #{mlp_forward.1} parent=1 // pred_check_branch
      %1052 = sbr.rel (0) target = $region57
    $region56: #{mlp_forward.1} parent=1 // pred_region
      _
    $region57: #{mlp_forward.1} parent=1 // pred_fallthru
      _
    %1053 = vsyncpa [#allocation3], 1
    %1054 = vsyncpa [#allocation5], 1
    %1055 = vsyncpa [#allocation8], 1

</llo_original>
